<compile_context>
chip_gen: v7x
topology: tpu7x:2x2x1
jax: 0.10.0
libtpu: 0.0.40
codegen_flags: <defaults>
</compile_context>

<pallas_src>
import jax
import jax.numpy as jnp
from jax.experimental import pallas as pl
from jax.experimental.pallas import tpu as pltpu


def _round_up(n, m):
    return ((n + m - 1) // m) * m


def mlp_kernel(x_ref, w1_ref, b1_ref, w2_ref, b2_ref, o_ref):
    # fc1: (rows, In) @ (In, H) + (1, H), ReLU (f32 accumulate on the MXU)
    h = jnp.dot(x_ref[...], w1_ref[...], preferred_element_type=jnp.float32)
    h = jnp.maximum(h + b1_ref[...], 0.0)
    # fc2: (rows, H) @ (H, C) + (1, C) -> narrow (C=2) store; masked vst is
    # invisible next to the DMA time on this HBM-bound kernel.
    out = jnp.dot(h, w2_ref[...], preferred_element_type=jnp.float32)
    o_ref[...] = (out + b2_ref[...]).astype(o_ref.dtype)


def my_model_forward(x, w1, b1, w2, b2, *, max_block_rows=8192):
    """Computes relu(x @ w1 + b1) @ w2 + b2 with a batch-tiled Pallas kernel.

    x:  (B, In) float32
    w1: (In, H), b1: (1, H)
    w2: (H, C), b2: (1, C)
    """
    B, In = x.shape
    H = w1.shape[1]
    C = w2.shape[1]

    # --- Row tile selection -------------------------------------------------
    # * multiple of 8 sublanes
    # * capped at max_block_rows (double-buffered x/out blocks are ~2 KiB/row
    #   after lane padding -> ~16 MiB at 8192 rows: fits v7x's 64 MiB VMEM
    #   with headroom, and v5e/v6e easily)
    # * capped at ~ceil(B/2) so large batches give >=2 grid steps for the
    #   "parallel" axis to shard across v7x's two TensorCores
    # * no batch padding: the last block may be ragged (OOB writes dropped)
    rows = min(
        max_block_rows,
        _round_up(max(pl.cdiv(B, 2), 1), 8),
        _round_up(max(B, 1), 8),
    )
    rows = max(rows, 8)
    grid = (pl.cdiv(B, rows),)

    # Scoped VMEM needed: 2 buffers x (x block + out block), both lane-padded
    # to 128 lanes in VMEM, plus tiny resident weights.  Raise the limit so
    # large tiles compile on v5e (16 MiB default scoped) as well.
    block_vmem = 2 * rows * (_round_up(In, 128) + _round_up(C, 128)) * 4
    weight_vmem = 4 * (In * _round_up(H, 128) + _round_up(H, 128)
                       + H * _round_up(C, 128) + _round_up(C, 128))
    vmem_limit = min(max(int(1.5 * (block_vmem + weight_vmem)), 16 << 20), 48 << 20)

    flops = 2 * B * In * H + 2 * B * H * C
    bytes_accessed = 4 * (B * In + In * H + H + H * C + C + B * C)

    out = pl.pallas_call(
        mlp_kernel,
        out_shape=jax.ShapeDtypeStruct((B, C), jnp.float32),
        grid=grid,
        in_specs=[
            # x: new tile each grid step (double-buffered by the pipeline)
            pl.BlockSpec((rows, In), lambda i: (i, 0)),
            # weights/biases: constant index_map -> loaded once, VMEM-resident
            pl.BlockSpec((In, H), lambda i: (0, 0)),
            pl.BlockSpec((1, H), lambda i: (0, 0)),
            pl.BlockSpec((H, C), lambda i: (0, 0)),
            pl.BlockSpec((1, C), lambda i: (0, 0)),
        ],
        out_specs=pl.BlockSpec((rows, C), lambda i: (i, 0)),
        compiler_params=pltpu.CompilerParams(
            # Batch rows are independent -> shard across the 2 TCs on v7x.
            dimension_semantics=("parallel",),
            vmem_limit_bytes=vmem_limit,
        ),
        cost_estimate=pl.CostEstimate(
            flops=flops, transcendentals=0, bytes_accessed=bytes_accessed
        ),
    )(x, w1, b1, w2, b2)

    return out


def init_params(key, input_size, hidden_size, num_classes):
    # Deterministic init mimicking torch.nn.Linear default (uniform +/- 1/sqrt(fan_in)).
    k1, k2, k3, k4 = jax.random.split(key, 4)
    bound1 = 1.0 / jnp.sqrt(input_size)
    bound2 = 1.0 / jnp.sqrt(hidden_size)
    # stored as (in_features, out_features) so the kernel does x @ W
    w1 = jax.random.uniform(k1, (input_size, hidden_size), jnp.float32, -bound1, bound1)
    b1 = jax.random.uniform(k2, (1, hidden_size), jnp.float32, -bound1, bound1)
    w2 = jax.random.uniform(k3, (hidden_size, num_classes), jnp.float32, -bound2, bound2)
    b2 = jax.random.uniform(k4, (1, num_classes), jnp.float32, -bound2, bound2)
    return w1, b1, w2, b2


def _reference(x, w1, b1, w2, b2):
    return jnp.maximum(x @ w1 + b1, 0.0) @ w2 + b2


if __name__ == "__main__":
    input_size = 10
    hidden_size = 32
    num_classes = 2

    key = jax.random.PRNGKey(0)
    kx, kx2, kx3, kp = jax.random.split(key, 4)
    w1, b1, w2, b2 = init_params(kp, input_size, hidden_size, num_classes)

    # Small batch (single ragged tile: 8-row block over 2 real rows).
    batch = 2
    x_small = jax.random.normal(kx, (batch, input_size), jnp.float32)
    out_small = jax.block_until_ready(my_model_forward(x_small, w1, b1, w2, b2))
    ref_small = _reference(x_small, w1, b1, w2, b2)
    assert out_small.shape == (batch, num_classes)
    assert jnp.allclose(out_small, ref_small, atol=1e-5, rtol=1e-5)

    # Aligned batch (single exact tile).
    x_mid = jax.random.normal(kx2, (8, input_size), jnp.float32)
    out_mid = jax.block_until_ready(my_model_forward(x_mid, w1, b1, w2, b2))
    ref_mid = _reference(x_mid, w1, b1, w2, b2)
    assert out_mid.shape == (8, num_classes)
    assert jnp.allclose(out_mid, ref_mid, atol=1e-5, rtol=1e-5)

    # Larger batch exercising the multi-step grid (>=2 steps) + ragged last block.
    big_batch = 1000
    x_big = jax.random.normal(kx3, (big_batch, input_size), jnp.float32)
    out_big = jax.block_until_ready(my_model_forward(x_big, w1, b1, w2, b2))
    ref_big = _reference(x_big, w1, b1, w2, b2)
    assert out_big.shape == (big_batch, num_classes)
    assert jnp.allclose(out_big, ref_big, atol=1e-4, rtol=1e-5)

    print("KERNEL_OK")
</pallas_src>

<mosaic_0001>
module attributes {stable_mosaic.version = 11 : i64} {
  func.func @mlp_kernel(%arg0: i32, %arg1: memref<8x10xf32, #tpu.memory_space<vmem>>, %arg2: memref<10x32xf32, #tpu.memory_space<vmem>>, %arg3: memref<1x32xf32, #tpu.memory_space<vmem>>, %arg4: memref<32x2xf32, #tpu.memory_space<vmem>>, %arg5: memref<1x2xf32, #tpu.memory_space<vmem>>, %arg6: memref<8x2xf32, #tpu.memory_space<vmem>>) attributes {dimension_semantics = [#tpu.dimension_semantics<parallel>], iteration_bounds = array<i64: 1>, scalar_prefetch = 0 : i64, scratch_operands = 0 : i64, tpu.core_type = #tpu.core_type<tc>, window_params = [{transform_indices = @transform_0, window_bounds = array<i64: 8, 10>}, {pipeline_mode = #tpu.pipeline_mode<synchronous>, transform_indices = @transform_1, window_bounds = array<i64: 10, 32>}, {pipeline_mode = #tpu.pipeline_mode<synchronous>, transform_indices = @transform_2, window_bounds = array<i64: 1, 32>}, {pipeline_mode = #tpu.pipeline_mode<synchronous>, transform_indices = @transform_3, window_bounds = array<i64: 32, 2>}, {pipeline_mode = #tpu.pipeline_mode<synchronous>, transform_indices = @transform_4, window_bounds = array<i64: 1, 2>}, {transform_indices = @transform_5, window_bounds = array<i64: 8, 2>}]} {
    %c0 = arith.constant 0 : index
    %c0_0 = arith.constant 0 : index
    %0 = vector.load %arg1[%c0, %c0_0] : memref<8x10xf32, #tpu.memory_space<vmem>>, vector<8x10xf32>
    %c0_1 = arith.constant 0 : index
    %c0_2 = arith.constant 0 : index
    %1 = vector.load %arg2[%c0_1, %c0_2] : memref<10x32xf32, #tpu.memory_space<vmem>>, vector<10x32xf32>
    %cst = arith.constant dense<0.000000e+00> : vector<8x32xf32>
    %2 = tpu.matmul %0, %1, %cst {dimension_numbers = #tpu.dot_dimension_numbers<[1], [0], [0], [1], [0, 0, 1, 1], [], []>} : vector<8x10xf32>, vector<10x32xf32>, vector<8x32xf32> -> vector<8x32xf32>
    %c0_3 = arith.constant 0 : index
    %c0_4 = arith.constant 0 : index
    %3 = vector.load %arg3[%c0_3, %c0_4] : memref<1x32xf32, #tpu.memory_space<vmem>>, vector<1x32xf32>
    %4 = vector.broadcast %3 : vector<1x32xf32> to vector<8x32xf32>
    %5 = arith.addf %2, %4 : vector<8x32xf32>
    %cst_5 = arith.constant 0.000000e+00 : f32
    %6 = vector.broadcast %cst_5 : f32 to vector<8x32xf32>
    %7 = arith.maximumf %5, %6 : vector<8x32xf32>
    %c0_6 = arith.constant 0 : index
    %c0_7 = arith.constant 0 : index
    %8 = vector.load %arg4[%c0_6, %c0_7] : memref<32x2xf32, #tpu.memory_space<vmem>>, vector<32x2xf32>
    %cst_8 = arith.constant dense<0.000000e+00> : vector<8x2xf32>
    %9 = tpu.matmul %7, %8, %cst_8 {dimension_numbers = #tpu.dot_dimension_numbers<[1], [0], [0], [1], [0, 0, 1, 1], [], []>} : vector<8x32xf32>, vector<32x2xf32>, vector<8x2xf32> -> vector<8x2xf32>
    %c0_9 = arith.constant 0 : index
    %c0_10 = arith.constant 0 : index
    %10 = vector.load %arg5[%c0_9, %c0_10] : memref<1x2xf32, #tpu.memory_space<vmem>>, vector<1x2xf32>
    %11 = vector.broadcast %10 : vector<1x2xf32> to vector<8x2xf32>
    %12 = arith.addf %9, %11 : vector<8x2xf32>
    %c0_11 = arith.constant 0 : index
    %c0_12 = arith.constant 0 : index
    %13 = vector.load %arg6[%c0_11, %c0_12] : memref<8x2xf32, #tpu.memory_space<vmem>>, vector<8x2xf32>
    tpu.vector_store %arg6[%c0_11, %c0_12], %12 {strides = array<i32>} : memref<8x2xf32, #tpu.memory_space<vmem>>, vector<8x2xf32>,
    return
  }
  func.func @transform_0(%arg0: i32) -> (i32, i32) {
    %c0_i32 = arith.constant 0 : i32
    %c0_i32_0 = arith.constant 0 : i32
    return %arg0, %c0_i32 : i32, i32
  }
  func.func @transform_1(%arg0: i32) -> (i32, i32) {
    %c0_i32 = arith.constant 0 : i32
    %c0_i32_0 = arith.constant 0 : i32
    %c0_i32_1 = arith.constant 0 : i32
    return %c0_i32, %c0_i32_0 : i32, i32
  }
  func.func @transform_2(%arg0: i32) -> (i32, i32) {
    %c0_i32 = arith.constant 0 : i32
    %c0_i32_0 = arith.constant 0 : i32
    %c0_i32_1 = arith.constant 0 : i32
    return %c0_i32, %c0_i32_0 : i32, i32
  }
  func.func @transform_3(%arg0: i32) -> (i32, i32) {
    %c0_i32 = arith.constant 0 : i32
    %c0_i32_0 = arith.constant 0 : i32
    %c0_i32_1 = arith.constant 0 : i32
    return %c0_i32, %c0_i32_0 : i32, i32
  }
  func.func @transform_4(%arg0: i32) -> (i32, i32) {
    %c0_i32 = arith.constant 0 : i32
    %c0_i32_0 = arith.constant 0 : i32
    %c0_i32_1 = arith.constant 0 : i32
    return %c0_i32, %c0_i32_0 : i32, i32
  }
  func.func @transform_5(%arg0: i32) -> (i32, i32) {
    %c0_i32 = arith.constant 0 : i32
    %c0_i32_0 = arith.constant 0 : i32
    return %arg0, %c0_i32 : i32, i32
  }
}

</mosaic_0001>

<llo_original>
// kernel: tpu_custom_call.1
$region0: #{tpu_custom_call.1}
  #allocation0 [shape = 'u32[]', space=smem, size = 0x4, offset = 0x4, fixed_abs, tag = 'smem constant byte address 0x4 - core index']
  #allocation1 [shape = 'u32[144,128]{1,0:T(1,128)}', space=vmem, size = 0x12000, scoped, tag = 'internal scratch']
  %s0 = inlined_call_operand.vmem [shape: f32[2,10], index: 0, kind: input, shape index: {}]
  %s1 = inlined_call_operand.vmem [shape: f32[10,32], index: 1, kind: input, shape index: {}]
  %s2 = inlined_call_operand.vmem [shape: f32[1,32], index: 2, kind: input, shape index: {}]
  %s3 = inlined_call_operand.vmem [shape: f32[32,2], index: 3, kind: input, shape index: {}]
  %s4 = inlined_call_operand.vmem [shape: f32[1,2], index: 4, kind: input, shape index: {}]
  %s5 = inlined_call_operand.hbm [shape: f32[2,2], index: 5, kind: output, shape index: {}]
  %s6 = sld [smem:[#allocation0]]
  $region30: #{tpu_custom_call.1} parent=0
    _
  %s8 = ssub.s32 1, %s6
  %s9 = scalar_select 0, %s8, %s6
  $region1: #{tpu_custom_call.1} parent=0
    #allocation2 [shape = 'u8[4096]{0}', space=vmem, size = 0x1000, scoped, tag = 'output window, operand 0, single buffered']
    #allocation3 [shape = 's32[1]{0}', space=sflag, size = 0x4, scoped, tag = 'scoped memory for tpu_custom_call.1']
    %10 = vsyncpa [#allocation3], 0
    // Predicated region
    $region2: #{tpu_custom_call.1} parent=1 // pred_check
      _
    $region3: #{tpu_custom_call.1} parent=1 // pred_check_branch
      %12 = sbr.rel (0) target = $region5
    $region4: #{tpu_custom_call.1} parent=1 // pred_region
      _
    $region5: #{tpu_custom_call.1} parent=1 // pred_fallthru
      _
    // Predicated region
    $region6: #{tpu_custom_call.1} parent=1 // pred_check
      _
    $region7: #{tpu_custom_call.1} parent=1 // pred_check_branch
      %14 = sbr.rel (0) target = $region9
    $region8: #{tpu_custom_call.1} parent=1 // pred_region
      _
    $region9: #{tpu_custom_call.1} parent=1 // pred_fallthru
      _
    // Predicated region
    $region10: #{tpu_custom_call.1} parent=1 // pred_check
      _
    $region11: #{tpu_custom_call.1} parent=1 // pred_check_branch
      %16 = sbr.rel (0) target = $region13
    $region12: #{tpu_custom_call.1} parent=1 // pred_region
      _
    $region13: #{tpu_custom_call.1} parent=1 // pred_fallthru
      _
    // Predicated region
    $region14: #{tpu_custom_call.1} parent=1 // pred_check
      _
    $region15: #{tpu_custom_call.1} parent=1 // pred_check_branch
      %18 = sbr.rel (0) target = $region17
    $region16: #{tpu_custom_call.1} parent=1 // pred_region
      _
    $region17: #{tpu_custom_call.1} parent=1 // pred_fallthru
      _
    // Predicated region
    $region18: #{tpu_custom_call.1} parent=1 // pred_check
      _
    $region19: #{tpu_custom_call.1} parent=1 // pred_check_branch
      %20 = sbr.rel (0) target = $region21
    $region20: #{tpu_custom_call.1} parent=1 // pred_region
      _
    $region21: #{tpu_custom_call.1} parent=1 // pred_fallthru
      _
    %v21 = vld [vmem:[%s0] sm:$0xff]
    %v22 = vld [vmem:[%s1] sm:$0xff]
    %v23 = vld [vmem:[%s1 + $0x8] sm:$0x3]
    %v24 = vld [vmem:[%s2] sm:$0x1]
    %v26 = vlaneseq
    %v27 = vshrl.u32 %v26, 7
    %v28 = vsub.s32 0, %v27
    %v29 = vrot.slane %v24, %v28
    %vm31 = vcmask 80896
    %v33 = vsel %vm31, %v21, 0
    %vm35 = vcmask 1041408
    %v37 = vsel %vm35, %v23, 0
    %39 = vmatprep.subr.mxu0 0.0
    %40 = vmatpush1.msra.mxu0 %v22
    %41 = vmatprep.subr.mxu0 0.0
    %42 = vmatpush1.msra.mxu0 %v37
    %43 = vmatprep.subr.mxu0 0.0
    %44 = vmatpush1.msra.mxu0 0.0
    %45 = vmatprep.subr.mxu0 0.0
    %46 = vmatpush1.msra.mxu0 0.0
    %47 = vmatprep.subr.mxu0 0.0
    %48 = vmatpush1.msra.mxu0 0.0
    %49 = vmatprep.subr.mxu0 0.0
    %50 = vmatpush1.msra.mxu0 0.0
    %51 = vmatprep.subr.mxu0 0.0
    %52 = vmatpush1.msra.mxu0 0.0
    %53 = vmatprep.subr.mxu0 0.0
    %54 = vmatpush1.msra.mxu0 0.0
    %55 = vmatprep.subr.mxu0 0.0
    %56 = vmatpush1.msra.mxu0 0.0
    %57 = vmatprep.subr.mxu0 0.0
    %58 = vmatpush1.msra.mxu0 0.0
    %59 = vmatprep.subr.mxu0 0.0
    %60 = vmatpush1.msra.mxu0 0.0
    %61 = vmatprep.subr.mxu0 0.0
    %62 = vmatpush1.msra.mxu0 0.0
    %63 = vmatprep.subr.mxu0 0.0
    %64 = vmatpush1.msra.mxu0 0.0
    %65 = vmatprep.subr.mxu0 0.0
    %66 = vmatpush1.msra.mxu0 0.0
    %67 = vmatprep.subr.mxu0 0.0
    %68 = vmatpush1.msra.mxu0 0.0
    %69 = vmatprep.subr.mxu0 0.0
    %70 = vmatpush1.msra.mxu0 0.0
    %71 = vmatprep.subr.mxu0 0.0
    %72 = vmatpush1.msra.mxu0 0.0
    %73 = vmatprep.subr.mxu0 0.0
    %74 = vmatpush1.msra.mxu0 0.0
    %75 = vmatprep.subr.mxu0 0.0
    %76 = vmatpush1.msra.mxu0 0.0
    %77 = vmatprep.subr.mxu0 0.0
    %78 = vmatpush1.msra.mxu0 0.0
    %79 = vmatprep.subr.mxu0 0.0
    %80 = vmatpush1.msra.mxu0 0.0
    %81 = vmatprep.subr.mxu0 0.0
    %82 = vmatpush1.msra.mxu0 0.0
    %83 = vmatprep.subr.mxu0 0.0
    %84 = vmatpush1.msra.mxu0 0.0
    %85 = vmatprep.subr.mxu0 0.0
    %86 = vmatpush1.msra.mxu0 0.0
    %87 = vmatprep.subr.mxu0 0.0
    %88 = vmatpush1.msra.mxu0 0.0
    %89 = vmatprep.subr.mxu0 0.0
    %90 = vmatpush1.msra.mxu0 0.0
    %91 = vmatprep.subr.mxu0 0.0
    %92 = vmatpush1.msra.mxu0 0.0
    %93 = vmatprep.subr.mxu0 0.0
    %94 = vmatpush1.msra.mxu0 0.0
    %95 = vmatprep.subr.mxu0 0.0
    %96 = vmatpush1.msra.mxu0 0.0
    %97 = vmatprep.subr.mxu0 0.0
    %98 = vmatpush1.msra.mxu0 0.0
    %99 = vmatprep.subr.mxu0 0.0
    %100 = vmatpush1.msra.mxu0 0.0
    %101 = vmatprep.subr.mxu0 0.0
    %102 = vmatpush1.msra.mxu0 0.0
    %103 = vmatprep.mubr.f32.mxu0 0.0
    %104 = vmatmul.mubr.f32.gmra.mrb[0].mxu0 %v33
    %v105 = vpop.f32.mrb[0].mxu0
    %v106 = vadd.f32 %v29, %v105
    %v107 = vpop.f32.mrb[0].mxu0
    %108 = vdwg.mxu0
    %v109 = vmax.f32 %v106, 0.0
    %v110 = vld [vmem:[%s3] sm:$0xff]
    %v111 = vld [vmem:[%s3 + $0x8] sm:$0xff]
    %v112 = vld [vmem:[%s3 + $0x10] sm:$0xff]
    %v113 = vld [vmem:[%s3 + $0x18] sm:$0xff]
    %v114 = vld [vmem:[%s4] sm:$0x1]
    %v116 = vlaneseq
    %v117 = vshrl.u32 %v116, 7
    %v118 = vsub.s32 0, %v117
    %v119 = vrot.slane %v114, %v118
    %vm121 = vcmask 261120
    %v123 = vsel %vm121, %v109, 0
    %125 = vmatprep.subr.mxu0 0.0
    %126 = vmatpush1.msra.mxu0 %v110
    %127 = vmatprep.subr.mxu0 0.0
    %128 = vmatpush1.msra.mxu0 %v111
    %129 = vmatprep.subr.mxu0 0.0
    %130 = vmatpush1.msra.mxu0 %v112
    %131 = vmatprep.subr.mxu0 0.0
    %132 = vmatpush1.msra.mxu0 %v113
    %133 = vmatprep.subr.mxu0 0.0
    %134 = vmatpush1.msra.mxu0 0.0
    %135 = vmatprep.subr.mxu0 0.0
    %136 = vmatpush1.msra.mxu0 0.0
    %137 = vmatprep.subr.mxu0 0.0
    %138 = vmatpush1.msra.mxu0 0.0
    %139 = vmatprep.subr.mxu0 0.0
    %140 = vmatpush1.msra.mxu0 0.0
    %141 = vmatprep.subr.mxu0 0.0
    %142 = vmatpush1.msra.mxu0 0.0
    %143 = vmatprep.subr.mxu0 0.0
    %144 = vmatpush1.msra.mxu0 0.0
    %145 = vmatprep.subr.mxu0 0.0
    %146 = vmatpush1.msra.mxu0 0.0
    %147 = vmatprep.subr.mxu0 0.0
    %148 = vmatpush1.msra.mxu0 0.0
    %149 = vmatprep.subr.mxu0 0.0
    %150 = vmatpush1.msra.mxu0 0.0
    %151 = vmatprep.subr.mxu0 0.0
    %152 = vmatpush1.msra.mxu0 0.0
    %153 = vmatprep.subr.mxu0 0.0
    %154 = vmatpush1.msra.mxu0 0.0
    %155 = vmatprep.subr.mxu0 0.0
    %156 = vmatpush1.msra.mxu0 0.0
    %157 = vmatprep.subr.mxu0 0.0
    %158 = vmatpush1.msra.mxu0 0.0
    %159 = vmatprep.subr.mxu0 0.0
    %160 = vmatpush1.msra.mxu0 0.0
    %161 = vmatprep.subr.mxu0 0.0
    %162 = vmatpush1.msra.mxu0 0.0
    %163 = vmatprep.subr.mxu0 0.0
    %164 = vmatpush1.msra.mxu0 0.0
    %165 = vmatprep.subr.mxu0 0.0
    %166 = vmatpush1.msra.mxu0 0.0
    %167 = vmatprep.subr.mxu0 0.0
    %168 = vmatpush1.msra.mxu0 0.0
    %169 = vmatprep.subr.mxu0 0.0
    %170 = vmatpush1.msra.mxu0 0.0
    %171 = vmatprep.subr.mxu0 0.0
    %172 = vmatpush1.msra.mxu0 0.0
    %173 = vmatprep.subr.mxu0 0.0
    %174 = vmatpush1.msra.mxu0 0.0
    %175 = vmatprep.subr.mxu0 0.0
    %176 = vmatpush1.msra.mxu0 0.0
    %177 = vmatprep.subr.mxu0 0.0
    %178 = vmatpush1.msra.mxu0 0.0
    %179 = vmatprep.subr.mxu0 0.0
    %180 = vmatpush1.msra.mxu0 0.0
    %181 = vmatprep.subr.mxu0 0.0
    %182 = vmatpush1.msra.mxu0 0.0
    %183 = vmatprep.subr.mxu0 0.0
    %184 = vmatpush1.msra.mxu0 0.0
    %185 = vmatprep.subr.mxu0 0.0
    %186 = vmatpush1.msra.mxu0 0.0
    %187 = vmatprep.subr.mxu0 0.0
    %188 = vmatpush1.msra.mxu0 0.0
    %189 = vmatprep.mubr.f32.mxu0 0.0
    %190 = vmatmul.mubr.f32.gmra.mrb[0].mxu0 %v123
    %v191 = vpop.f32.mrb[0].mxu0
    %v192 = vadd.f32 %v119, %v191
    %v193 = vpop.f32.mrb[0].mxu0
    %194 = vdwg.mxu0
    %vm195 = vcmask 15360
    %196 = vst.msk [vmem:[#allocation2] sm:$0xff] %vm195, %v192
    // Predicated region
    $region22: #{tpu_custom_call.1} parent=1 // pred_check
      _
    $region23: #{tpu_custom_call.1} parent=1 // pred_check_branch
      %198 = sbr.rel (0) target = $region25
    $region24: #{tpu_custom_call.1} parent=1 // pred_region
      %s200 = ssub.s32 128, 32
      %201 = vsyncadd [#allocation3], %s200
      %s202 = sshll.u32 [#allocation2], 4
      %s203 = int_to_ptr.vmem [resolvable:$true] %s202
      %208 = dma.vmem_to_hbm [thread:$0]  %s203, 32, %s5, [#allocation3], 32, 32, 2
    $region25: #{tpu_custom_call.1} parent=1 // pred_fallthru
      _
    // Predicated region
    $region26: #{tpu_custom_call.1} parent=1 // pred_check
      _
    $region27: #{tpu_custom_call.1} parent=1 // pred_check_branch
      %210 = sbr.rel (0) target = $region29
    $region28: #{tpu_custom_call.1} parent=1 // pred_region
      %211 = dma.done [#allocation3], 128
    $region29: #{tpu_custom_call.1} parent=1 // pred_fallthru
      _
    %212 = vsyncpa [#allocation3], 1

</llo_original>
